<compile_context>
chip_gen: v6e
topology: v6e:2x2x1
jax: 0.10.0
libtpu: 0.0.40
codegen_flags: <defaults>
</compile_context>

<pallas_src>
import jax
import jax.numpy as jnp
from jax.experimental import pallas as pl
from jax.experimental.pallas import tpu as pltpu

# ---- "cfg" constants (synthetic, small) -------------------------------------
NUM_CLASSES = 8                  # cfg.MODEL.NUM_CLASSES
CLS_AGNOSTIC_BBOX_REG = False    # cfg.MODEL.CLS_AGNOSTIC_BBOX_REG
BBOX_OUT = 4 * 2 if CLS_AGNOSTIC_BBOX_REG else 4 * NUM_CLASSES
TOTAL_OUT = NUM_CLASSES + BBOX_OUT               # 40
LANE = 128
PAD_OUT = -(-TOTAL_OUT // LANE) * LANE           # lane-dense output width (128)

COMPUTE_DTYPE = jnp.bfloat16     # inputs + packed weights (f32 accumulate)
MAX_TILE_N = 1024                # v6e/v5e-friendly cap; budget check trims for v7x
DATA_VMEM_BUDGET = 32 << 20      # bytes of pipeline buffers we aim to occupy
VMEM_LIMIT_BYTES = 48 << 20      # scoped limit: < v7x 64 MiB phys, << v5e/v6e 128 MiB


def _cdiv(a, b):
    return -(-a // b)


def _round_up(x, m):
    return -(-x // m) * m


def _choose_tile_n(n, dim_in, in_itemsize, out_itemsize=4):
    """Largest TN (multiple of 16) whose double-buffered x/q/out tiles plus the
    single-buffered resident weights fit DATA_VMEM_BUDGET; then split into >=2
    grid steps when N allows so v7x's two TensorCores both get work."""
    resident = 2 * dim_in * PAD_OUT * in_itemsize + PAD_OUT * out_itemsize
    per_row = 2 * 2 * dim_in * in_itemsize + 2 * PAD_OUT * out_itemsize
    tn = max(16, (DATA_VMEM_BUDGET - resident) // per_row)
    tn = max(16, (tn // 16) * 16)          # round down to a bf16-friendly sublane multiple
    tn = min(MAX_TILE_N, tn)
    tiles = _cdiv(n, tn)
    if n >= 32:
        tiles = max(tiles, 2)              # v7x: shard "parallel" axis over both TCs
    tn = min(tn, _round_up(_cdiv(n, tiles), 16))
    return int(tn)


def _fast_rcnn_outputs_co_kernel(x_ref, q_ref, wx_ref, wq_ref, b_ref, out_ref):
    # Fused pass: y = [x | query] @ W_all + b_all, with W_all pre-composed
    # (Linear1 @ Linear2) and both heads packed into one 128-lane slab.
    # Inputs/weights are bf16; accumulate + epilogue in f32.
    y = (
        jnp.dot(x_ref[...], wx_ref[...], preferred_element_type=jnp.float32)
        + jnp.dot(q_ref[...], wq_ref[...], preferred_element_type=jnp.float32)
        + b_ref[...]
    )
    lane = jax.lax.broadcasted_iota(jnp.int32, y.shape, dimension=1)
    is_cls = lane < NUM_CLASSES

    # numerically stable softmax restricted to the cls lanes
    # (bbox / padding lanes masked to -inf so they contribute exp(-inf)=0)
    masked = jnp.where(is_cls, y, -jnp.inf)
    m = jnp.max(masked, axis=-1, keepdims=True)
    e = jnp.exp(masked - m)                          # zero outside cls lanes
    denom = jnp.sum(e, axis=-1, keepdims=True)
    probs = e / denom                                # exact divide ([TN,1], cheap)

    # lanes [0,8): cls probabilities, [8,40): raw bbox regression, rest: zeros
    out_ref[...] = jnp.where(is_cls, probs, y)


def fast_rcnn_outputs_co(x, query_feat, packed, *, return_packed=False):
    """Forward pass (eval mode). x, query_feat: [N, dim_in] or [N, dim_in, 1, 1].

    packed: (w_x, w_q, b_all) from pack_params().
    Returns (cls_prob [N, NUM_CLASSES], bbox_pred [N, BBOX_OUT]), or the packed
    lane-dense [N, 128] slab if return_packed=True (avoids two slice copies when
    the consumer can index it directly).
    """
    if x.ndim == 4:
        x = x[:, :, 0, 0]            # squeeze(3).squeeze(2)
    if query_feat.ndim == 4:
        query_feat = query_feat[:, :, 0, 0]
    w_x, w_q, b_all = packed
    n, dim_in = x.shape

    in_dtype = w_x.dtype
    in_itemsize = jnp.dtype(in_dtype).itemsize
    x = x.astype(in_dtype)
    query_feat = query_feat.astype(in_dtype)

    tn = _choose_tile_n(n, dim_in, in_itemsize)
    grid = (pl.cdiv(n, tn),)

    cost = pl.CostEstimate(
        flops=4 * n * dim_in * PAD_OUT,              # two matmuls, 2 flops/MAC
        transcendentals=n * PAD_OUT,                 # exp over the output slab
        bytes_accessed=(2 * n * dim_in + 2 * dim_in * PAD_OUT) * in_itemsize
        + (n + 1) * PAD_OUT * 4,
    )

    out = pl.pallas_call(
        _fast_rcnn_outputs_co_kernel,
        out_shape=jax.ShapeDtypeStruct((n, PAD_OUT), jnp.float32),
        grid=grid,
        in_specs=[
            pl.BlockSpec((tn, dim_in), lambda i: (i, 0)),       # x tile
            pl.BlockSpec((tn, dim_in), lambda i: (i, 0)),       # query tile
            # constant-index residents: single-buffered (no wasted VMEM)
            pl.BlockSpec((dim_in, PAD_OUT), lambda i: (0, 0),
                         pipeline_mode=pl.Buffered(1)),          # W (x half)
            pl.BlockSpec((dim_in, PAD_OUT), lambda i: (0, 0),
                         pipeline_mode=pl.Buffered(1)),          # W (q half)
            pl.BlockSpec((1, PAD_OUT), lambda i: (0, 0),
                         pipeline_mode=pl.Buffered(1)),          # bias (f32)
        ],
        out_specs=pl.BlockSpec((tn, PAD_OUT), lambda i: (i, 0)),
        compiler_params=pltpu.CompilerParams(
            dimension_semantics=("parallel",),       # shard N over v7x's 2 TCs
            vmem_limit_bytes=VMEM_LIMIT_BYTES,
        ),
        cost_estimate=cost,
    )(x, query_feat, w_x, w_q, b_all)

    if return_packed:
        return out
    cls_prob = out[:, :NUM_CLASSES]
    bbox_pred = out[:, NUM_CLASSES:TOTAL_OUT]
    return cls_prob, bbox_pred


def pack_params(p, dim_in, compute_dtype=COMPUTE_DTYPE):
    """Compose each head's two Linears (in f32!) and pack both heads into one
    lane-dense weight/bias pair, split into x / query_feat halves (no concat in
    HBM). Only the final packed weights are cast to the compute dtype; the bias
    stays f32 (added in the f32 epilogue)."""
    f32 = jnp.float32
    w_cls = p["cls_w1"].astype(f32) @ p["cls_w2"].astype(f32)       # (2*dim_in, NUM_CLASSES)
    b_cls = p["cls_b1"].astype(f32) @ p["cls_w2"].astype(f32) + p["cls_b2"]
    w_bbox = p["bbox_w1"].astype(f32) @ p["bbox_w2"].astype(f32)    # (2*dim_in, BBOX_OUT)
    b_bbox = p["bbox_b1"].astype(f32) @ p["bbox_w2"].astype(f32) + p["bbox_b2"]

    w_all = jnp.zeros((2 * dim_in, PAD_OUT), f32)
    w_all = w_all.at[:, :NUM_CLASSES].set(w_cls)
    w_all = w_all.at[:, NUM_CLASSES:TOTAL_OUT].set(w_bbox)
    b_all = jnp.zeros((1, PAD_OUT), f32)
    b_all = b_all.at[:, :NUM_CLASSES].set(b_cls)
    b_all = b_all.at[:, NUM_CLASSES:TOTAL_OUT].set(b_bbox)
    return (w_all[:dim_in].astype(compute_dtype),
            w_all[dim_in:].astype(compute_dtype),
            b_all)


def init_params(key, dim_in):
    """Synthetic init matching the module's _init_weights (PyTorch Linear is
    (out,in); we keep (in,out) so the kernel computes x @ W + b)."""
    ks = jax.random.split(key, 4)
    d2 = 2 * dim_in
    return {
        # cls head: std=0.01, biases 0
        "cls_w1": 0.01 * jax.random.normal(ks[0], (d2, 8), jnp.float32),
        "cls_b1": jnp.zeros((1, 8), jnp.float32),
        "cls_w2": 0.01 * jax.random.normal(ks[1], (8, NUM_CLASSES), jnp.float32),
        "cls_b2": jnp.zeros((1, NUM_CLASSES), jnp.float32),
        # bbox head: std=0.001, biases 0
        "bbox_w1": 0.001 * jax.random.normal(ks[2], (d2, 32), jnp.float32),
        "bbox_b1": jnp.zeros((1, 32), jnp.float32),
        "bbox_w2": 0.001 * jax.random.normal(ks[3], (32, BBOX_OUT), jnp.float32),
        "bbox_b2": jnp.zeros((1, BBOX_OUT), jnp.float32),
    }


if __name__ == "__main__":
    key = jax.random.PRNGKey(0)
    k_x, k_q, k_p = jax.random.split(key, 3)

    N, DIM_IN = 16, 32
    # PyTorch-style 4-D inputs (N, C, 1, 1) from 1x1-pooled ROI features
    x = jax.random.normal(k_x, (N, DIM_IN, 1, 1), jnp.float32)
    query_feat = jax.random.normal(k_q, (N, DIM_IN, 1, 1), jnp.float32)

    params = init_params(k_p, DIM_IN)
    packed = pack_params(params, DIM_IN)

    cls_prob, bbox_pred = fast_rcnn_outputs_co(x, query_feat, packed)
    jax.block_until_ready((cls_prob, bbox_pred))

    # pure-JAX f32 reference on the un-composed weights (exact division)
    x2, q2 = x[:, :, 0, 0], query_feat[:, :, 0, 0]
    xc = jnp.concatenate([x2, q2], axis=1)
    h = xc @ params["cls_w1"] + params["cls_b1"]
    logits = h @ params["cls_w2"] + params["cls_b2"]
    ref_cls = jax.nn.softmax(logits, axis=1)
    hb = xc @ params["bbox_w1"] + params["bbox_b1"]
    ref_bbox = hb @ params["bbox_w2"] + params["bbox_b2"]

    assert cls_prob.shape == (N, NUM_CLASSES)
    assert bbox_pred.shape == (N, BBOX_OUT)
    # Tolerances account for bf16 inputs/weights (f32 accumulate) and the
    # composed-weight summation reorder vs the PyTorch-style reference.
    assert jnp.allclose(cls_prob, ref_cls, atol=2e-3, rtol=2e-3)
    assert jnp.allclose(jnp.sum(cls_prob, axis=1), 1.0, atol=1e-3)
    assert jnp.allclose(bbox_pred, ref_bbox, atol=2e-5, rtol=2e-2)

    print("KERNEL_OK")
</pallas_src>

<mosaic_0001>
module attributes {stable_mosaic.version = 11 : i64} {
  func.func @_fast_rcnn_outputs_co_kernel(%arg0: i32, %arg1: memref<16x32xbf16, #tpu.memory_space<vmem>>, %arg2: memref<16x32xbf16, #tpu.memory_space<vmem>>, %arg3: memref<32x128xbf16, #tpu.memory_space<vmem>>, %arg4: memref<32x128xbf16, #tpu.memory_space<vmem>>, %arg5: memref<1x128xf32, #tpu.memory_space<vmem>>, %arg6: memref<16x128xf32, #tpu.memory_space<vmem>>) attributes {dimension_semantics = [#tpu.dimension_semantics<parallel>], iteration_bounds = array<i64: 1>, scalar_prefetch = 0 : i64, scratch_operands = 0 : i64, tpu.core_type = #tpu.core_type<tc>, window_params = [{transform_indices = @transform_0, window_bounds = array<i64: 16, 32>}, {transform_indices = @transform_1, window_bounds = array<i64: 16, 32>}, {pipeline_mode = #tpu.pipeline_mode<synchronous>, transform_indices = @transform_2, window_bounds = array<i64: 32, 128>}, {pipeline_mode = #tpu.pipeline_mode<synchronous>, transform_indices = @transform_3, window_bounds = array<i64: 32, 128>}, {pipeline_mode = #tpu.pipeline_mode<synchronous>, transform_indices = @transform_4, window_bounds = array<i64: 1, 128>}, {transform_indices = @transform_5, window_bounds = array<i64: 16, 128>}]} {
    %c0 = arith.constant 0 : index
    %c0_0 = arith.constant 0 : index
    %0 = vector.load %arg1[%c0, %c0_0] : memref<16x32xbf16, #tpu.memory_space<vmem>>, vector<16x32xbf16>
    %c0_1 = arith.constant 0 : index
    %c0_2 = arith.constant 0 : index
    %1 = vector.load %arg3[%c0_1, %c0_2] : memref<32x128xbf16, #tpu.memory_space<vmem>>, vector<32x128xbf16>
    %cst = arith.constant dense<0.000000e+00> : vector<16x128xf32>
    %2 = tpu.matmul %0, %1, %cst {dimension_numbers = #tpu.dot_dimension_numbers<[1], [0], [0], [1], [0, 0, 1, 1], [], []>} : vector<16x32xbf16>, vector<32x128xbf16>, vector<16x128xf32> -> vector<16x128xf32>
    %c0_3 = arith.constant 0 : index
    %c0_4 = arith.constant 0 : index
    %3 = vector.load %arg2[%c0_3, %c0_4] : memref<16x32xbf16, #tpu.memory_space<vmem>>, vector<16x32xbf16>
    %c0_5 = arith.constant 0 : index
    %c0_6 = arith.constant 0 : index
    %4 = vector.load %arg4[%c0_5, %c0_6] : memref<32x128xbf16, #tpu.memory_space<vmem>>, vector<32x128xbf16>
    %cst_7 = arith.constant dense<0.000000e+00> : vector<16x128xf32>
    %5 = tpu.matmul %3, %4, %cst_7 {dimension_numbers = #tpu.dot_dimension_numbers<[1], [0], [0], [1], [0, 0, 1, 1], [], []>} : vector<16x32xbf16>, vector<32x128xbf16>, vector<16x128xf32> -> vector<16x128xf32>
    %6 = arith.addf %2, %5 : vector<16x128xf32>
    %c0_8 = arith.constant 0 : index
    %c0_9 = arith.constant 0 : index
    %7 = vector.load %arg5[%c0_8, %c0_9] : memref<1x128xf32, #tpu.memory_space<vmem>>, vector<1x128xf32>
    %8 = vector.broadcast %7 : vector<1x128xf32> to vector<16x128xf32>
    %9 = arith.addf %6, %8 : vector<16x128xf32>
    %10 = tpu.iota {dimensions = array<i32: 1>} : vector<16x128xi32>
    %c8_i32 = arith.constant 8 : i32
    %11 = vector.broadcast %c8_i32 : i32 to vector<16x128xi32>
    %12 = arith.cmpi slt, %10, %11 : vector<16x128xi32>
    %cst_10 = arith.constant 0xFF800000 : f32
    %13 = vector.broadcast %cst_10 : f32 to vector<16x128xf32>
    %14 = arith.select %12, %9, %13 : vector<16x128xi1>, vector<16x128xf32>
    %cst_11 = arith.constant dense<0xFF800000> : vector<16xf32>
    %15 = vector.multi_reduction <maximumf>, %14, %cst_11 [1] : vector<16x128xf32> to vector<16xf32>
    %16 = vector.shape_cast %15 : vector<16xf32> to vector<16x1xf32>
    %17 = vector.broadcast %16 : vector<16x1xf32> to vector<16x128xf32>
    %18 = arith.subf %14, %17 : vector<16x128xf32>
    %19 = math.exp %18 : vector<16x128xf32>
    %cst_12 = arith.constant dense<0.000000e+00> : vector<16xf32>
    %20 = vector.multi_reduction <add>, %19, %cst_12 [1] : vector<16x128xf32> to vector<16xf32>
    %21 = vector.shape_cast %20 : vector<16xf32> to vector<16x1xf32>
    %22 = vector.broadcast %21 : vector<16x1xf32> to vector<16x128xf32>
    %23 = arith.divf %19, %22 : vector<16x128xf32>
    %24 = arith.select %12, %23, %9 : vector<16x128xi1>, vector<16x128xf32>
    %c0_13 = arith.constant 0 : index
    %c0_14 = arith.constant 0 : index
    %25 = vector.load %arg6[%c0_13, %c0_14] : memref<16x128xf32, #tpu.memory_space<vmem>>, vector<16x128xf32>
    tpu.vector_store %arg6[%c0_13, %c0_14], %24 {strides = array<i32>} : memref<16x128xf32, #tpu.memory_space<vmem>>, vector<16x128xf32>,
    return
  }
  func.func @transform_0(%arg0: i32) -> (i32, i32) {
    %c0_i32 = arith.constant 0 : i32
    %c0_i32_0 = arith.constant 0 : i32
    return %arg0, %c0_i32 : i32, i32
  }
  func.func @transform_1(%arg0: i32) -> (i32, i32) {
    %c0_i32 = arith.constant 0 : i32
    %c0_i32_0 = arith.constant 0 : i32
    return %arg0, %c0_i32 : i32, i32
  }
  func.func @transform_2(%arg0: i32) -> (i32, i32) {
    %c0_i32 = arith.constant 0 : i32
    %c0_i32_0 = arith.constant 0 : i32
    %c0_i32_1 = arith.constant 0 : i32
    return %c0_i32, %c0_i32_0 : i32, i32
  }
  func.func @transform_3(%arg0: i32) -> (i32, i32) {
    %c0_i32 = arith.constant 0 : i32
    %c0_i32_0 = arith.constant 0 : i32
    %c0_i32_1 = arith.constant 0 : i32
    return %c0_i32, %c0_i32_0 : i32, i32
  }
  func.func @transform_4(%arg0: i32) -> (i32, i32) {
    %c0_i32 = arith.constant 0 : i32
    %c0_i32_0 = arith.constant 0 : i32
    %c0_i32_1 = arith.constant 0 : i32
    return %c0_i32, %c0_i32_0 : i32, i32
  }
  func.func @transform_5(%arg0: i32) -> (i32, i32) {
    %c0_i32 = arith.constant 0 : i32
    %c0_i32_0 = arith.constant 0 : i32
    return %arg0, %c0_i32 : i32, i32
  }
}

</mosaic_0001>

<llo_original>
// kernel: tpu_custom_call.1
$region0: #{tpu_custom_call.1}
  #allocation0 [shape = 'u32[]', space=smem, size = 0x4, offset = 0x4, fixed_abs, tag = 'smem constant byte address 0x4 - core index']
  #allocation1 [shape = 'u32[144,128]{1,0:T(1,128)}', space=vmem, size = 0x12000, scoped, tag = 'internal scratch']
  %s0 = inlined_call_operand.hbm [shape: bf16[16,32], index: 0, kind: input, shape index: {}]
  %s1 = inlined_call_operand.hbm [shape: bf16[16,32], index: 1, kind: input, shape index: {}]
  %s2 = inlined_call_operand.hbm [shape: bf16[32,128], index: 2, kind: input, shape index: {}]
  %s3 = inlined_call_operand.hbm [shape: bf16[32,128], index: 3, kind: input, shape index: {}]
  %s4 = inlined_call_operand.vmem [shape: f32[1,128], index: 4, kind: input, shape index: {}]
  %s5 = inlined_call_operand.hbm [shape: f32[16,128], index: 5, kind: output, shape index: {}]
  %s6 = sld [smem:[#allocation0]]
  $region46: #{tpu_custom_call.1} parent=0
    _
  %s8 = ssub.s32 1, %s6
  %s9 = scalar_select 0, %s8, %s6
  $region1: #{tpu_custom_call.1} parent=0
    #allocation2 [shape = 'u8[4096]{0}', space=vmem, size = 0x1000, scoped, tag = 'input window, operand 0, single buffered']
    #allocation3 [shape = 's32[1]{0}', space=sflag, size = 0x4, scoped, tag = 'scoped memory for tpu_custom_call.1']
    #allocation4 [shape = 's32[1]{0}', space=sflag, size = 0x4, scoped, tag = 'scoped memory for tpu_custom_call.1']
    #allocation5 [shape = 'u8[4096]{0}', space=vmem, size = 0x1000, scoped, tag = 'input window, operand 1, single buffered']
    #allocation6 [shape = 's32[1]{0}', space=sflag, size = 0x4, scoped, tag = 'scoped memory for tpu_custom_call.1']
    #allocation7 [shape = 'u8[8192]{0}', space=vmem, size = 0x2000, scoped, tag = 'input window, operand 2, single buffered']
    #allocation8 [shape = 'u8[8192]{0}', space=vmem, size = 0x2000, scoped, tag = 'input window, operand 3, single buffered']
    #allocation9 [shape = 's32[1]{0}', space=sflag, size = 0x4, scoped, tag = 'scoped memory for tpu_custom_call.1']
    #allocation10 [shape = 'u8[8192]{0}', space=vmem, size = 0x2000, scoped, tag = 'output window, operand 0, single buffered']
    %10 = vsyncpa [#allocation3], 0
    %11 = vsyncpa [#allocation6], 0
    %12 = vsyncpa [#allocation9], 0
    %13 = vsyncpa [#allocation4], 0
    // Predicated region
    $region2: #{tpu_custom_call.1} parent=1 // pred_check
      _
    $region3: #{tpu_custom_call.1} parent=1 // pred_check_branch
      %15 = sbr.rel (0) target = $region5
    $region4: #{tpu_custom_call.1} parent=1 // pred_region
      %s17 = ssub.s32 128, 128
      %18 = vsyncadd [#allocation3], %s17
      %s19 = sshll.u32 [#allocation2], 4
      %s20 = int_to_ptr.vmem [resolvable:$true] %s19
      %25 = dma.hbm_to_vmem [thread:$0]  %s0, 128, %s20, [#allocation3], 64, 64, 4
    $region5: #{tpu_custom_call.1} parent=1 // pred_fallthru
      _
    // Predicated region
    $region6: #{tpu_custom_call.1} parent=1 // pred_check
      _
    $region7: #{tpu_custom_call.1} parent=1 // pred_check_branch
      %27 = sbr.rel (0) target = $region9
    $region8: #{tpu_custom_call.1} parent=1 // pred_region
      %s29 = ssub.s32 128, 128
      %30 = vsyncadd [#allocation6], %s29
      %s31 = sshll.u32 [#allocation5], 4
      %s32 = int_to_ptr.vmem [resolvable:$true] %s31
      %37 = dma.hbm_to_vmem [thread:$0]  %s1, 128, %s32, [#allocation6], 64, 64, 4
    $region9: #{tpu_custom_call.1} parent=1 // pred_fallthru
      _
    // Predicated region
    $region10: #{tpu_custom_call.1} parent=1 // pred_check
      _
    $region11: #{tpu_custom_call.1} parent=1 // pred_check_branch
      %39 = sbr.rel (0) target = $region13
    $region12: #{tpu_custom_call.1} parent=1 // pred_region
      %s41 = ssub.s32 256, 256
      %42 = vsyncadd [#allocation6], %s41
      %s43 = sshll.u32 [#allocation7], 4
      %s44 = int_to_ptr.vmem [resolvable:$true] %s43
      %49 = dma.hbm_to_vmem [thread:$0]  %s2, 256, %s44, [#allocation6], 64, 64, 4
    $region13: #{tpu_custom_call.1} parent=1 // pred_fallthru
      _
    // Predicated region
    $region14: #{tpu_custom_call.1} parent=1 // pred_check
      _
    $region15: #{tpu_custom_call.1} parent=1 // pred_check_branch
      %51 = sbr.rel (0) target = $region17
    $region16: #{tpu_custom_call.1} parent=1 // pred_region
      %s53 = ssub.s32 256, 256
      %54 = vsyncadd [#allocation9], %s53
      %s55 = sshll.u32 [#allocation8], 4
      %s56 = int_to_ptr.vmem [resolvable:$true] %s55
      %61 = dma.hbm_to_vmem [thread:$0]  %s3, 256, %s56, [#allocation9], 64, 64, 4
    $region17: #{tpu_custom_call.1} parent=1 // pred_fallthru
      _
    // Predicated region
    $region18: #{tpu_custom_call.1} parent=1 // pred_check
      _
    $region19: #{tpu_custom_call.1} parent=1 // pred_check_branch
      %63 = sbr.rel (0) target = $region21
    $region20: #{tpu_custom_call.1} parent=1 // pred_region
      _
    $region21: #{tpu_custom_call.1} parent=1 // pred_fallthru
      _
    // Predicated region
    $region22: #{tpu_custom_call.1} parent=1 // pred_check
      _
    $region23: #{tpu_custom_call.1} parent=1 // pred_check_branch
      %65 = sbr.rel (0) target = $region25
    $region24: #{tpu_custom_call.1} parent=1 // pred_region
      %66 = dma.done [#allocation3], 128
    $region25: #{tpu_custom_call.1} parent=1 // pred_fallthru
      _
    // Predicated region
    $region26: #{tpu_custom_call.1} parent=1 // pred_check
      _
    $region27: #{tpu_custom_call.1} parent=1 // pred_check_branch
      %68 = sbr.rel (0) target = $region29
    $region28: #{tpu_custom_call.1} parent=1 // pred_region
      %69 = dma.done [#allocation6], 128
    $region29: #{tpu_custom_call.1} parent=1 // pred_fallthru
      _
    // Predicated region
    $region30: #{tpu_custom_call.1} parent=1 // pred_check
      _
    $region31: #{tpu_custom_call.1} parent=1 // pred_check_branch
      %71 = sbr.rel (0) target = $region33
    $region32: #{tpu_custom_call.1} parent=1 // pred_region
      %72 = dma.done [#allocation6], 256
    $region33: #{tpu_custom_call.1} parent=1 // pred_fallthru
      _
    // Predicated region
    $region34: #{tpu_custom_call.1} parent=1 // pred_check
      _
    $region35: #{tpu_custom_call.1} parent=1 // pred_check_branch
      %74 = sbr.rel (0) target = $region37
    $region36: #{tpu_custom_call.1} parent=1 // pred_region
      %75 = dma.done [#allocation9], 256
    $region37: #{tpu_custom_call.1} parent=1 // pred_fallthru
      _
    %v77 = vld [vmem:[#allocation2] sm:$0xf]
    %v78 = vld [vmem:[#allocation2 + $0x4] sm:$0xf]
    %v79 = vld [vmem:[#allocation7] sm:$0xf]
    %v80 = vld [vmem:[#allocation7 + $0x4] sm:$0xf]
    %v81 = vld [vmem:[#allocation7 + $0x8] sm:$0xf]
    %v82 = vld [vmem:[#allocation7 + $0xc] sm:$0xf]
    %v83 = vld [vmem:[#allocation5] sm:$0xf]
    %v84 = vld [vmem:[#allocation5 + $0x4] sm:$0xf]
    %v85 = vld [vmem:[#allocation8] sm:$0xf]
    %v86 = vld [vmem:[#allocation8 + $0x4] sm:$0xf]
    %v87 = vld [vmem:[#allocation8 + $0x8] sm:$0xf]
    %v88 = vld [vmem:[#allocation8 + $0xc] sm:$0xf]
    %v91 = vunpack.c.l.b16 %v83
    %v92 = vunpack.c.l.b16 %v84
    %v93 = vpack.c.b16 %v92, %v91
    %v98 = vunpack.c.l.b16 %v85
    %v99 = vunpack.c.l.b16 %v86
    %v100 = vunpack.c.l.b16 %v87
    %v101 = vunpack.c.l.b16 %v88
    %v102 = vpack.c.b16 %v99, %v98
    %v103 = vpack.c.b16 %v101, %v100
    %vm106 = vcmask 261120
    %v108 = vsel %vm106, %v93, 0
    %110 = vmatprep.subr.bf16.mxu0 0
    %111 = vmatpush1.bf16.msra.mxu0 0
    %112 = vmatprep.subr.bf16.mxu0 0
    %113 = vmatpush1.bf16.msra.mxu0 0
    %114 = vmatprep.subr.bf16.mxu0 0
    %115 = vmatpush1.bf16.msra.mxu0 0
    %116 = vmatprep.subr.bf16.mxu0 0
    %117 = vmatpush1.bf16.msra.mxu0 0
    %118 = vmatprep.subr.bf16.mxu0 0
    %119 = vmatpush1.bf16.msra.mxu0 0
    %120 = vmatprep.subr.bf16.mxu0 0
    %121 = vmatpush1.bf16.msra.mxu0 0
    %122 = vmatprep.subr.bf16.mxu0 0
    %123 = vmatpush1.bf16.msra.mxu0 %v103
    %124 = vmatprep.subr.bf16.mxu0 0
    %125 = vmatpush1.bf16.msra.mxu0 %v102
    %126 = vmatprep.subr.bf16.mxu0 0
    %127 = vmatpush2.bf16.msra.mxu0 0
    %128 = vmatprep.subr.bf16.mxu0 0
    %129 = vmatpush2.bf16.msra.mxu0 0
    %130 = vmatprep.subr.bf16.mxu0 0
    %131 = vmatpush2.bf16.msra.mxu0 0
    %132 = vmatprep.subr.bf16.mxu0 0
    %133 = vmatpush2.bf16.msra.mxu0 0
    %134 = vmatprep.subr.bf16.mxu0 0
    %135 = vmatpush2.bf16.msra.mxu0 0
    %136 = vmatprep.subr.bf16.mxu0 0
    %137 = vmatpush2.bf16.msra.mxu0 0
    %138 = vmatprep.subr.bf16.mxu0 0
    %139 = vmatpush2.bf16.msra.mxu0 0
    %140 = vmatprep.subr.bf16.mxu0 0
    %141 = vmatpush2.bf16.msra.mxu0 0
    %142 = vmatprep.mubr.bf16.mxu0 0
    %143 = vmatmul.mubr.bf16.gmra.mxu0 %v108
    %v144 = vpop.f32.mrf.mxu0
    %v145 = vadd.f32 0.0, %v144
    %v146 = vpop.f32.mrf.mxu0
    %v147 = vpop.f32.mrf.mxu0
    %v148 = vadd.f32 0.0, %v147
    %v149 = vpop.f32.mrf.mxu0
    %150 = vdwg.mxu0
    %v153 = vunpack.c.l.b16 %v77
    %v154 = vunpack.c.l.b16 %v78
    %v155 = vpack.c.b16 %v154, %v153
    %v160 = vunpack.c.l.b16 %v79
    %v161 = vunpack.c.l.b16 %v80
    %v162 = vunpack.c.l.b16 %v81
    %v163 = vunpack.c.l.b16 %v82
    %v164 = vpack.c.b16 %v161, %v160
    %v165 = vpack.c.b16 %v163, %v162
    %v169 = vsel %vm106, %v155, 0
    %171 = vmatprep.subr.bf16.mxu0 0
    %172 = vmatpush1.bf16.msra.mxu0 0
    %173 = vmatprep.subr.bf16.mxu0 0
    %174 = vmatpush1.bf16.msra.mxu0 0
    %175 = vmatprep.subr.bf16.mxu0 0
    %176 = vmatpush1.bf16.msra.mxu0 0
    %177 = vmatprep.subr.bf16.mxu0 0
    %178 = vmatpush1.bf16.msra.mxu0 0
    %179 = vmatprep.subr.bf16.mxu0 0
    %180 = vmatpush1.bf16.msra.mxu0 0
    %181 = vmatprep.subr.bf16.mxu0 0
    %182 = vmatpush1.bf16.msra.mxu0 0
    %183 = vmatprep.subr.bf16.mxu0 0
    %184 = vmatpush1.bf16.msra.mxu0 %v165
    %185 = vmatprep.subr.bf16.mxu0 0
    %186 = vmatpush1.bf16.msra.mxu0 %v164
    %187 = vmatprep.subr.bf16.mxu0 0
    %188 = vmatpush2.bf16.msra.mxu0 0
    %189 = vmatprep.subr.bf16.mxu0 0
    %190 = vmatpush2.bf16.msra.mxu0 0
    %191 = vmatprep.subr.bf16.mxu0 0
    %192 = vmatpush2.bf16.msra.mxu0 0
    %193 = vmatprep.subr.bf16.mxu0 0
    %194 = vmatpush2.bf16.msra.mxu0 0
    %195 = vmatprep.subr.bf16.mxu0 0
    %196 = vmatpush2.bf16.msra.mxu0 0
    %197 = vmatprep.subr.bf16.mxu0 0
    %198 = vmatpush2.bf16.msra.mxu0 0
    %199 = vmatprep.subr.bf16.mxu0 0
    %200 = vmatpush2.bf16.msra.mxu0 0
    %201 = vmatprep.subr.bf16.mxu0 0
    %202 = vmatpush2.bf16.msra.mxu0 0
    %203 = vmatprep.mubr.bf16.mxu0 0
    %204 = vmatmul.mubr.bf16.gmra.mxu0 %v169
    %v205 = vpop.f32.mrf.mxu0
    %v206 = vadd.f32 %v145, %v205
    %v207 = vpop.f32.mrf.mxu0
    %v208 = vpop.f32.mrf.mxu0
    %v209 = vadd.f32 %v148, %v208
    %v210 = vpop.f32.mrf.mxu0
    %211 = vdwg.mxu0
    %v212 = vld [vmem:[%s4] sm:$0x1]
    %v214 = vlaneseq
    %v215 = vshrl.u32 %v214, 7
    %v216 = vsub.s32 0, %v215
    %v217 = vrot.slane %v212, %v216
    %v219 = vadd.f32 %v206, %v217
    %v220 = vadd.f32 %v209, %v217
    %v221 = vlaneseq
    %v222 = vand.u32 %v221, 127
    %vm223 = vcmp.lt.s32.totalorder %v222, 8
    %v224 = vsel %vm223, %v219, -inf
    %v225 = vsel %vm223, %v220, -inf
    %226 = vmax.xlane.f32.xlu0 %v224
    %v227 = vpop.xlane.xlu0 %226
    %228 = vmax.xlane.f32.xlu0 %v225
    %v229 = vpop.xlane.xlu0 %228
    %v230 = vsub.f32 %v224, %v227
    %v231 = vsub.f32 %v225, %v229
    %v232 = vmul.f32 %v230, 1.442695
    %v233 = vpow.pop %v232
    %v234 = vmul.f32 %v231, 1.442695
    %v235 = vpow.pop %v234
    %236 = vadd.xlane.f32.xlu0 %v233
    %v237 = vpop.xlane.xlu0 %236
    %238 = vadd.xlane.f32.xlu0 %v235
    %v239 = vpop.xlane.xlu0 %238
    %v240 = vrcp.pop %v237
    %v241 = vmul.f32 %v233, %v240
    %v242 = vrcp.pop %v239
    %v243 = vmul.f32 %v235, %v242
    %v244 = vsel %vm223, %v241, %v219
    %v245 = vsel %vm223, %v243, %v220
    %246 = vst [vmem:[#allocation10] sm:$0xff] %v244
    %247 = vst [vmem:[#allocation10 + $0x8] sm:$0xff] %v245
    // Predicated region
    $region38: #{tpu_custom_call.1} parent=1 // pred_check
      _
    $region39: #{tpu_custom_call.1} parent=1 // pred_check_branch
      %249 = sbr.rel (0) target = $region41
    $region40: #{tpu_custom_call.1} parent=1 // pred_region
      %s251 = ssub.s32 256, 256
      %252 = vsyncadd [#allocation4], %s251
      %s253 = sshll.u32 [#allocation10], 4
      %s254 = int_to_ptr.vmem [resolvable:$true] %s253
      %259 = dma.vmem_to_hbm [thread:$0]  %s254, 256, %s5, [#allocation4], 128, 128, 8
    $region41: #{tpu_custom_call.1} parent=1 // pred_fallthru
      _
    // Predicated region
    $region42: #{tpu_custom_call.1} parent=1 // pred_check
      _
    $region43: #{tpu_custom_call.1} parent=1 // pred_check_branch
      %261 = sbr.rel (0) target = $region45
    $region44: #{tpu_custom_call.1} parent=1 // pred_region
      %262 = dma.done [#allocation4], 256
    $region45: #{tpu_custom_call.1} parent=1 // pred_fallthru
      _
    %263 = vsyncpa [#allocation3], 1
    %264 = vsyncpa [#allocation6], 1
    %265 = vsyncpa [#allocation9], 1
    %266 = vsyncpa [#allocation4], 1

</llo_original>
